<compile_context>
chip_gen: v6e
topology: v6e:2x2x1
jax: 0.10.0
libtpu: 0.0.40
codegen_flags: <defaults>
</compile_context>

<pallas_src>
import functools

import jax
import jax.numpy as jnp
from jax.experimental import pallas as pl
from jax.experimental.pallas import tpu as pltpu


_OUT_LANES = 128  # lane-dense padded width of the final output block


def _round_up(n, m):
    return ((n + m - 1) // m) * m


def _mlp_kernel(x_ref, w1_ref, b1_ref, w2_ref, b2_ref,
                w3_ref, b3_ref, w4_ref, b4_ref, o_ref):
    # Fused 4-layer MLP hot path: matmuls + bias + ReLU entirely in VMEM/MXU.
    h = jnp.dot(x_ref[...], w1_ref[...],
                preferred_element_type=jnp.float32) + b1_ref[...]
    h = jnp.maximum(h, 0.0)
    h = jnp.dot(h, w2_ref[...],
                preferred_element_type=jnp.float32) + b2_ref[...]
    h = jnp.maximum(h, 0.0)
    h = jnp.dot(h, w3_ref[...],
                preferred_element_type=jnp.float32) + b3_ref[...]
    h = jnp.maximum(h, 0.0)
    # Final layer uses lane-padded (64, 128) weights (only col 0 is real) so
    # the output block is lane-dense and stores are unmasked.
    out = jnp.dot(h, w4_ref[...],
                  preferred_element_type=jnp.float32) + b4_ref[...]
    o_ref[...] = out.astype(o_ref.dtype)


def _pick_block_b(B):
    """Batch tile: fill the MXU M dimension at large B, single step otherwise."""
    if B >= 1024:
        return 512   # v7x-safe: activations << scoped VMEM, >=2 grid steps
    if B >= 256:
        return 256
    if B >= 128:
        return 128
    return _round_up(B, 8)  # small batch: one padded grid step


@functools.partial(jax.jit, static_argnames=("block_b",))
def critic_best_forward(x, params, block_b=None):
    """x: (B, state_dim) float32. params: dict of w1..w4 (in,out), b1..b4 (1,out)."""
    B, D = x.shape
    if block_b is None:
        block_b = _pick_block_b(B)
    B_pad = _round_up(B, block_b)

    w1, b1 = params["w1"], params["b1"]
    w2, b2 = params["w2"], params["b2"]
    w3, b3 = params["w3"], params["b3"]
    w4, b4 = params["w4"], params["b4"]

    # Pad the 64->1 layer out to 128 lanes (zeros beyond column 0).
    w4p = jnp.zeros((w4.shape[0], _OUT_LANES), w4.dtype).at[:, :1].set(w4)
    b4p = jnp.zeros((1, _OUT_LANES), b4.dtype).at[:, :1].set(b4)

    # Pad the batch so the grid covers it exactly; extra rows sliced off below.
    if B_pad != B:
        x = jnp.pad(x, ((0, B_pad - B), (0, 0)))

    grid = (B_pad // block_b,)

    # Weights / biases are small enough to live fully in VMEM: full-array
    # blocks, block index fixed at (0, 0) across the batch grid.
    def full2d(shape):
        return pl.BlockSpec(shape, lambda i: (0, 0))

    flops = 2 * B_pad * (D * 512 + 512 * 256 + 256 * 64 + 64 * _OUT_LANES)
    bytes_accessed = (
        B_pad * D * x.dtype.itemsize
        + sum(int(p.size) * p.dtype.itemsize
              for p in (w1, b1, w2, b2, w3, b3, w4p, b4p))
        + B_pad * _OUT_LANES * 4)

    out = pl.pallas_call(
        _mlp_kernel,
        out_shape=jax.ShapeDtypeStruct((B_pad, _OUT_LANES), x.dtype),
        grid_spec=pltpu.PrefetchScalarGridSpec(
            num_scalar_prefetch=0,
            grid=grid,
            in_specs=[
                pl.BlockSpec((block_b, D), lambda i: (i, 0)),  # x tile
                full2d(w1.shape), full2d(b1.shape),
                full2d(w2.shape), full2d(b2.shape),
                full2d(w3.shape), full2d(b3.shape),
                full2d(w4p.shape), full2d(b4p.shape),
            ],
            out_specs=pl.BlockSpec((block_b, _OUT_LANES), lambda i: (i, 0)),
        ),
        compiler_params=pltpu.CompilerParams(
            dimension_semantics=("parallel",)),
        cost_estimate=pl.CostEstimate(
            flops=flops, transcendentals=0, bytes_accessed=bytes_accessed),
    )(x, w1, b1, w2, b2, w3, b3, w4p, b4p)

    # Drop padded rows and the padded lanes: true output is column 0.
    return out[:B, :1]


def init_params(key, state_dim):
    """Deterministic init mimicking PyTorch Linear default (uniform +-1/sqrt(fan_in)).
    Weights stored as (in, out) = transpose of PyTorch's (out, in)."""
    dims = [(state_dim, 512), (512, 256), (256, 64), (64, 1)]
    params = {}
    for idx, (fan_in, fan_out) in enumerate(dims, start=1):
        key, kw, kb = jax.random.split(key, 3)
        bound = 1.0 / jnp.sqrt(float(fan_in))
        params[f"w{idx}"] = jax.random.uniform(
            kw, (fan_in, fan_out), jnp.float32, -bound, bound)
        params[f"b{idx}"] = jax.random.uniform(
            kb, (1, fan_out), jnp.float32, -bound, bound)
    return params


def _reference(x, params):
    h = jnp.maximum(x @ params["w1"] + params["b1"], 0.0)
    h = jnp.maximum(h @ params["w2"] + params["b2"], 0.0)
    h = jnp.maximum(h @ params["w3"] + params["b3"], 0.0)
    return h @ params["w4"] + params["b4"]


if __name__ == "__main__":
    key = jax.random.PRNGKey(0)
    state_dim = 32
    batch = 8

    k_x, k_p = jax.random.split(key)
    x = jax.random.normal(k_x, (batch, state_dim), jnp.float32)
    params = init_params(k_p, state_dim)

    out = critic_best_forward(x, params)
    out = jax.block_until_ready(out)

    ref = _reference(x, params)
    assert out.shape == (batch, 1), out.shape
    assert jnp.allclose(out, ref, atol=1e-4, rtol=1e-4), (
        "Pallas output mismatch vs reference")

    # Also exercise a batch that is not a multiple of the tile size and large
    # enough to use the 128-row MXU tiles.
    x_big = jax.random.normal(k_x, (300, state_dim), jnp.float32)
    out_big = jax.block_until_ready(critic_best_forward(x_big, params))
    ref_big = _reference(x_big, params)
    assert out_big.shape == (300, 1), out_big.shape
    assert jnp.allclose(out_big, ref_big, atol=1e-4, rtol=1e-4), (
        "Pallas output mismatch vs reference (large batch)")

    print("KERNEL_OK")
</pallas_src>

<mosaic_0001>
module attributes {stable_mosaic.version = 11 : i64} {
  func.func @_mlp_kernel(%arg0: i32, %arg1: memref<8x32xf32, #tpu.memory_space<vmem>>, %arg2: memref<32x512xf32, #tpu.memory_space<vmem>>, %arg3: memref<1x512xf32, #tpu.memory_space<vmem>>, %arg4: memref<512x256xf32, #tpu.memory_space<vmem>>, %arg5: memref<1x256xf32, #tpu.memory_space<vmem>>, %arg6: memref<256x64xf32, #tpu.memory_space<vmem>>, %arg7: memref<1x64xf32, #tpu.memory_space<vmem>>, %arg8: memref<64x128xf32, #tpu.memory_space<vmem>>, %arg9: memref<1x128xf32, #tpu.memory_space<vmem>>, %arg10: memref<8x128xf32, #tpu.memory_space<vmem>>) attributes {dimension_semantics = [#tpu.dimension_semantics<parallel>], iteration_bounds = array<i64: 1>, scalar_prefetch = 0 : i64, scratch_operands = 0 : i64, tpu.core_type = #tpu.core_type<tc>, window_params = [{transform_indices = @transform_0, window_bounds = array<i64: 8, 32>}, {pipeline_mode = #tpu.pipeline_mode<synchronous>, transform_indices = @transform_1, window_bounds = array<i64: 32, 512>}, {pipeline_mode = #tpu.pipeline_mode<synchronous>, transform_indices = @transform_2, window_bounds = array<i64: 1, 512>}, {pipeline_mode = #tpu.pipeline_mode<synchronous>, transform_indices = @transform_3, window_bounds = array<i64: 512, 256>}, {pipeline_mode = #tpu.pipeline_mode<synchronous>, transform_indices = @transform_4, window_bounds = array<i64: 1, 256>}, {pipeline_mode = #tpu.pipeline_mode<synchronous>, transform_indices = @transform_5, window_bounds = array<i64: 256, 64>}, {pipeline_mode = #tpu.pipeline_mode<synchronous>, transform_indices = @transform_6, window_bounds = array<i64: 1, 64>}, {pipeline_mode = #tpu.pipeline_mode<synchronous>, transform_indices = @transform_7, window_bounds = array<i64: 64, 128>}, {pipeline_mode = #tpu.pipeline_mode<synchronous>, transform_indices = @transform_8, window_bounds = array<i64: 1, 128>}, {transform_indices = @transform_9, window_bounds = array<i64: 8, 128>}]} {
    %c0 = arith.constant 0 : index
    %c0_0 = arith.constant 0 : index
    %0 = vector.load %arg1[%c0, %c0_0] : memref<8x32xf32, #tpu.memory_space<vmem>>, vector<8x32xf32>
    %c0_1 = arith.constant 0 : index
    %c0_2 = arith.constant 0 : index
    %1 = vector.load %arg2[%c0_1, %c0_2] : memref<32x512xf32, #tpu.memory_space<vmem>>, vector<32x512xf32>
    %cst = arith.constant dense<0.000000e+00> : vector<8x512xf32>
    %2 = tpu.matmul %0, %1, %cst {dimension_numbers = #tpu.dot_dimension_numbers<[1], [0], [0], [1], [0, 0, 1, 1], [], []>} : vector<8x32xf32>, vector<32x512xf32>, vector<8x512xf32> -> vector<8x512xf32>
    %c0_3 = arith.constant 0 : index
    %c0_4 = arith.constant 0 : index
    %3 = vector.load %arg3[%c0_3, %c0_4] : memref<1x512xf32, #tpu.memory_space<vmem>>, vector<1x512xf32>
    %4 = vector.broadcast %3 : vector<1x512xf32> to vector<8x512xf32>
    %5 = arith.addf %2, %4 : vector<8x512xf32>
    %cst_5 = arith.constant 0.000000e+00 : f32
    %6 = vector.broadcast %cst_5 : f32 to vector<8x512xf32>
    %7 = arith.maximumf %5, %6 : vector<8x512xf32>
    %c0_6 = arith.constant 0 : index
    %c0_7 = arith.constant 0 : index
    %8 = vector.load %arg4[%c0_6, %c0_7] : memref<512x256xf32, #tpu.memory_space<vmem>>, vector<512x256xf32>
    %cst_8 = arith.constant dense<0.000000e+00> : vector<8x256xf32>
    %9 = tpu.matmul %7, %8, %cst_8 {dimension_numbers = #tpu.dot_dimension_numbers<[1], [0], [0], [1], [0, 0, 1, 1], [], []>} : vector<8x512xf32>, vector<512x256xf32>, vector<8x256xf32> -> vector<8x256xf32>
    %c0_9 = arith.constant 0 : index
    %c0_10 = arith.constant 0 : index
    %10 = vector.load %arg5[%c0_9, %c0_10] : memref<1x256xf32, #tpu.memory_space<vmem>>, vector<1x256xf32>
    %11 = vector.broadcast %10 : vector<1x256xf32> to vector<8x256xf32>
    %12 = arith.addf %9, %11 : vector<8x256xf32>
    %cst_11 = arith.constant 0.000000e+00 : f32
    %13 = vector.broadcast %cst_11 : f32 to vector<8x256xf32>
    %14 = arith.maximumf %12, %13 : vector<8x256xf32>
    %c0_12 = arith.constant 0 : index
    %c0_13 = arith.constant 0 : index
    %15 = vector.load %arg6[%c0_12, %c0_13] : memref<256x64xf32, #tpu.memory_space<vmem>>, vector<256x64xf32>
    %cst_14 = arith.constant dense<0.000000e+00> : vector<8x64xf32>
    %16 = tpu.matmul %14, %15, %cst_14 {dimension_numbers = #tpu.dot_dimension_numbers<[1], [0], [0], [1], [0, 0, 1, 1], [], []>} : vector<8x256xf32>, vector<256x64xf32>, vector<8x64xf32> -> vector<8x64xf32>
    %c0_15 = arith.constant 0 : index
    %c0_16 = arith.constant 0 : index
    %17 = vector.load %arg7[%c0_15, %c0_16] : memref<1x64xf32, #tpu.memory_space<vmem>>, vector<1x64xf32>
    %18 = vector.broadcast %17 : vector<1x64xf32> to vector<8x64xf32>
    %19 = arith.addf %16, %18 : vector<8x64xf32>
    %cst_17 = arith.constant 0.000000e+00 : f32
    %20 = vector.broadcast %cst_17 : f32 to vector<8x64xf32>
    %21 = arith.maximumf %19, %20 : vector<8x64xf32>
    %c0_18 = arith.constant 0 : index
    %c0_19 = arith.constant 0 : index
    %22 = vector.load %arg8[%c0_18, %c0_19] : memref<64x128xf32, #tpu.memory_space<vmem>>, vector<64x128xf32>
    %cst_20 = arith.constant dense<0.000000e+00> : vector<8x128xf32>
    %23 = tpu.matmul %21, %22, %cst_20 {dimension_numbers = #tpu.dot_dimension_numbers<[1], [0], [0], [1], [0, 0, 1, 1], [], []>} : vector<8x64xf32>, vector<64x128xf32>, vector<8x128xf32> -> vector<8x128xf32>
    %c0_21 = arith.constant 0 : index
    %c0_22 = arith.constant 0 : index
    %24 = vector.load %arg9[%c0_21, %c0_22] : memref<1x128xf32, #tpu.memory_space<vmem>>, vector<1x128xf32>
    %25 = vector.broadcast %24 : vector<1x128xf32> to vector<8x128xf32>
    %26 = arith.addf %23, %25 : vector<8x128xf32>
    %c0_23 = arith.constant 0 : index
    %c0_24 = arith.constant 0 : index
    %27 = vector.load %arg10[%c0_23, %c0_24] : memref<8x128xf32, #tpu.memory_space<vmem>>, vector<8x128xf32>
    tpu.vector_store %arg10[%c0_23, %c0_24], %26 {strides = array<i32>} : memref<8x128xf32, #tpu.memory_space<vmem>>, vector<8x128xf32>,
    return
  }
  func.func @transform_0(%arg0: i32) -> (i32, i32) {
    %c0_i32 = arith.constant 0 : i32
    %c0_i32_0 = arith.constant 0 : i32
    return %arg0, %c0_i32 : i32, i32
  }
  func.func @transform_1(%arg0: i32) -> (i32, i32) {
    %c0_i32 = arith.constant 0 : i32
    %c0_i32_0 = arith.constant 0 : i32
    %c0_i32_1 = arith.constant 0 : i32
    return %c0_i32, %c0_i32_0 : i32, i32
  }
  func.func @transform_2(%arg0: i32) -> (i32, i32) {
    %c0_i32 = arith.constant 0 : i32
    %c0_i32_0 = arith.constant 0 : i32
    %c0_i32_1 = arith.constant 0 : i32
    return %c0_i32, %c0_i32_0 : i32, i32
  }
  func.func @transform_3(%arg0: i32) -> (i32, i32) {
    %c0_i32 = arith.constant 0 : i32
    %c0_i32_0 = arith.constant 0 : i32
    %c0_i32_1 = arith.constant 0 : i32
    return %c0_i32, %c0_i32_0 : i32, i32
  }
  func.func @transform_4(%arg0: i32) -> (i32, i32) {
    %c0_i32 = arith.constant 0 : i32
    %c0_i32_0 = arith.constant 0 : i32
    %c0_i32_1 = arith.constant 0 : i32
    return %c0_i32, %c0_i32_0 : i32, i32
  }
  func.func @transform_5(%arg0: i32) -> (i32, i32) {
    %c0_i32 = arith.constant 0 : i32
    %c0_i32_0 = arith.constant 0 : i32
    %c0_i32_1 = arith.constant 0 : i32
    return %c0_i32, %c0_i32_0 : i32, i32
  }
  func.func @transform_6(%arg0: i32) -> (i32, i32) {
    %c0_i32 = arith.constant 0 : i32
    %c0_i32_0 = arith.constant 0 : i32
    %c0_i32_1 = arith.constant 0 : i32
    return %c0_i32, %c0_i32_0 : i32, i32
  }
  func.func @transform_7(%arg0: i32) -> (i32, i32) {
    %c0_i32 = arith.constant 0 : i32
    %c0_i32_0 = arith.constant 0 : i32
    %c0_i32_1 = arith.constant 0 : i32
    return %c0_i32, %c0_i32_0 : i32, i32
  }
  func.func @transform_8(%arg0: i32) -> (i32, i32) {
    %c0_i32 = arith.constant 0 : i32
    %c0_i32_0 = arith.constant 0 : i32
    %c0_i32_1 = arith.constant 0 : i32
    return %c0_i32, %c0_i32_0 : i32, i32
  }
  func.func @transform_9(%arg0: i32) -> (i32, i32) {
    %c0_i32 = arith.constant 0 : i32
    %c0_i32_0 = arith.constant 0 : i32
    return %arg0, %c0_i32 : i32, i32
  }
}

</mosaic_0001>

<llo_original>
// kernel: critic_best_forward.1
$region0: #{critic_best_forward.1}
  #allocation0 [shape = 'u32[]', space=smem, size = 0x4, offset = 0x4, fixed_abs, tag = 'smem constant byte address 0x4 - core index']
  #allocation1 [shape = 'u32[144,128]{1,0:T(1,128)}', space=vmem, size = 0x12000, scoped, tag = 'internal scratch']
  %s0 = inlined_call_operand.vmem [shape: f32[8,32], index: 0, kind: input, shape index: {}]
  %s1 = inlined_call_operand.vmem [shape: f32[32,512], index: 1, kind: input, shape index: {}]
  %s2 = inlined_call_operand.vmem [shape: f32[1,512], index: 2, kind: input, shape index: {}]
  %s3 = inlined_call_operand.hbm [shape: f32[512,256], index: 3, kind: input, shape index: {}]
  %s4 = inlined_call_operand.vmem [shape: f32[1,256], index: 4, kind: input, shape index: {}]
  %s5 = inlined_call_operand.vmem [shape: f32[256,64], index: 5, kind: input, shape index: {}]
  %s6 = inlined_call_operand.vmem [shape: f32[1,64], index: 6, kind: input, shape index: {}]
  %s7 = inlined_call_operand.vmem [shape: f32[64,128], index: 7, kind: input, shape index: {}]
  %s8 = inlined_call_operand.vmem [shape: f32[1,128], index: 8, kind: input, shape index: {}]
  %s9 = inlined_call_operand.vmem [shape: f32[8,128], index: 9, kind: output, shape index: {}]
  %s10 = sld [smem:[#allocation0]]
  $region50: #{critic_best_forward.1} parent=0
    _
  %s12 = ssub.s32 1, %s10
  %s13 = scalar_select 0, %s12, %s10
  $region1: #{critic_best_forward.1} parent=0
    #allocation2 [shape = 'u8[524288]{0}', space=vmem, size = 0x80000, scoped, tag = 'input window, operand 3, single buffered']
    #allocation3 [shape = 's32[1]{0}', space=sflag, size = 0x4, scoped, tag = 'scoped memory for critic_best_forward.1']
    %14 = vsyncpa [#allocation3], 0
    // Predicated region
    $region2: #{critic_best_forward.1} parent=1 // pred_check
      _
    $region3: #{critic_best_forward.1} parent=1 // pred_check_branch
      %16 = sbr.rel (0) target = $region5
    $region4: #{critic_best_forward.1} parent=1 // pred_region
      _
    $region5: #{critic_best_forward.1} parent=1 // pred_fallthru
      _
    // Predicated region
    $region6: #{critic_best_forward.1} parent=1 // pred_check
      _
    $region7: #{critic_best_forward.1} parent=1 // pred_check_branch
      %18 = sbr.rel (0) target = $region9
    $region8: #{critic_best_forward.1} parent=1 // pred_region
      _
    $region9: #{critic_best_forward.1} parent=1 // pred_fallthru
      _
    // Predicated region
    $region10: #{critic_best_forward.1} parent=1 // pred_check
      _
    $region11: #{critic_best_forward.1} parent=1 // pred_check_branch
      %20 = sbr.rel (0) target = $region13
    $region12: #{critic_best_forward.1} parent=1 // pred_region
      _
    $region13: #{critic_best_forward.1} parent=1 // pred_fallthru
      _
    // Predicated region
    $region14: #{critic_best_forward.1} parent=1 // pred_check
      _
    $region15: #{critic_best_forward.1} parent=1 // pred_check_branch
      %22 = sbr.rel (0) target = $region17
    $region16: #{critic_best_forward.1} parent=1 // pred_region
      %s24 = ssub.s32 16384, 16384
      %25 = vsyncadd [#allocation3], %s24
      %s26 = sshll.u32 [#allocation2], 4
      %s27 = int_to_ptr.vmem [resolvable:$true] %s26
      %32 = dma.hbm_to_vmem [thread:$0]  %s3, 16384, %s27, [#allocation3], 256, 256, 16
    $region17: #{critic_best_forward.1} parent=1 // pred_fallthru
      _
    // Predicated region
    $region18: #{critic_best_forward.1} parent=1 // pred_check
      _
    $region19: #{critic_best_forward.1} parent=1 // pred_check_branch
      %34 = sbr.rel (0) target = $region21
    $region20: #{critic_best_forward.1} parent=1 // pred_region
      _
    $region21: #{critic_best_forward.1} parent=1 // pred_fallthru
      _
    // Predicated region
    $region22: #{critic_best_forward.1} parent=1 // pred_check
      _
    $region23: #{critic_best_forward.1} parent=1 // pred_check_branch
      %36 = sbr.rel (0) target = $region25
    $region24: #{critic_best_forward.1} parent=1 // pred_region
      _
    $region25: #{critic_best_forward.1} parent=1 // pred_fallthru
      _
    // Predicated region
    $region26: #{critic_best_forward.1} parent=1 // pred_check
      _
    $region27: #{critic_best_forward.1} parent=1 // pred_check_branch
      %38 = sbr.rel (0) target = $region29
    $region28: #{critic_best_forward.1} parent=1 // pred_region
      _
    $region29: #{critic_best_forward.1} parent=1 // pred_fallthru
      _
    // Predicated region
    $region30: #{critic_best_forward.1} parent=1 // pred_check
      _
    $region31: #{critic_best_forward.1} parent=1 // pred_check_branch
      %40 = sbr.rel (0) target = $region33
    $region32: #{critic_best_forward.1} parent=1 // pred_region
      _
    $region33: #{critic_best_forward.1} parent=1 // pred_fallthru
      _
    // Predicated region
    $region34: #{critic_best_forward.1} parent=1 // pred_check
      _
    $region35: #{critic_best_forward.1} parent=1 // pred_check_branch
      %42 = sbr.rel (0) target = $region37
    $region36: #{critic_best_forward.1} parent=1 // pred_region
      _
    $region37: #{critic_best_forward.1} parent=1 // pred_fallthru
      _
    // Predicated region
    $region38: #{critic_best_forward.1} parent=1 // pred_check
      _
    $region39: #{critic_best_forward.1} parent=1 // pred_check_branch
      %44 = sbr.rel (0) target = $region41
    $region40: #{critic_best_forward.1} parent=1 // pred_region
      %45 = dma.done [#allocation3], 16384
    $region41: #{critic_best_forward.1} parent=1 // pred_fallthru
      _
    %v46 = vld [vmem:[%s0] sm:$0xff]
    %v47 = vld [vmem:[%s1] sm:$0xff]
    %v48 = vld [vmem:[%s1 + $0x8] sm:$0xff]
    %v49 = vld [vmem:[%s1 + $0x10] sm:$0xff]
    %v50 = vld [vmem:[%s1 + $0x18] sm:$0xff]
    %v51 = vld [vmem:[%s1 + $0x20] sm:$0xff]
    %v52 = vld [vmem:[%s1 + $0x28] sm:$0xff]
    %v53 = vld [vmem:[%s1 + $0x30] sm:$0xff]
    %v54 = vld [vmem:[%s1 + $0x38] sm:$0xff]
    %v55 = vld [vmem:[%s1 + $0x40] sm:$0xff]
    %v56 = vld [vmem:[%s1 + $0x48] sm:$0xff]
    %v57 = vld [vmem:[%s1 + $0x50] sm:$0xff]
    %v58 = vld [vmem:[%s1 + $0x58] sm:$0xff]
    %v59 = vld [vmem:[%s1 + $0x60] sm:$0xff]
    %v60 = vld [vmem:[%s1 + $0x68] sm:$0xff]
    %v61 = vld [vmem:[%s1 + $0x70] sm:$0xff]
    %v62 = vld [vmem:[%s1 + $0x78] sm:$0xff]
    %v63 = vld [vmem:[%s2] sm:$0xf]
    %v65 = vlaneseq
    %v66 = vshrl.u32 %v65, 7
    %v67 = vsub.s32 0, %v66
    %v68 = vrot.slane %v63, %v67
    %v69 = vlaneseq
    %v70 = vshrl.u32 %v69, 7
    %v71 = vsub.s32 1, %v70
    %v72 = vrot.slane %v63, %v71
    %v73 = vlaneseq
    %v74 = vshrl.u32 %v73, 7
    %v75 = vsub.s32 2, %v74
    %v76 = vrot.slane %v63, %v75
    %v77 = vlaneseq
    %v78 = vshrl.u32 %v77, 7
    %v79 = vsub.s32 3, %v78
    %v80 = vrot.slane %v63, %v79
    %vm85 = vcmask 261120
    %v87 = vsel %vm85, %v46, 0
    %89 = vmatprep.subr.mxu0 0.0
    %90 = vmatpush1.msra.mxu0 0.0
    %91 = vmatprep.subr.mxu0 0.0
    %92 = vmatpush1.msra.mxu0 0.0
    %93 = vmatprep.subr.mxu0 0.0
    %94 = vmatpush1.msra.mxu0 0.0
    %95 = vmatprep.subr.mxu0 0.0
    %96 = vmatpush1.msra.mxu0 0.0
    %97 = vmatprep.subr.mxu0 0.0
    %98 = vmatpush1.msra.mxu0 0.0
    %99 = vmatprep.subr.mxu0 0.0
    %100 = vmatpush1.msra.mxu0 0.0
    %101 = vmatprep.subr.mxu0 0.0
    %102 = vmatpush1.msra.mxu0 0.0
    %103 = vmatprep.subr.mxu0 0.0
    %104 = vmatpush1.msra.mxu0 0.0
    %105 = vmatprep.subr.mxu0 0.0
    %106 = vmatpush1.msra.mxu0 0.0
    %107 = vmatprep.subr.mxu0 0.0
    %108 = vmatpush1.msra.mxu0 0.0
    %109 = vmatprep.subr.mxu0 0.0
    %110 = vmatpush1.msra.mxu0 0.0
    %111 = vmatprep.subr.mxu0 0.0
    %112 = vmatpush1.msra.mxu0 0.0
    %113 = vmatprep.subr.mxu0 %v60
    %114 = vmatpush1.msra.mxu0 %v59
    %115 = vmatprep.subr.mxu0 %v56
    %116 = vmatpush1.msra.mxu0 %v55
    %117 = vmatprep.subr.mxu0 %v52
    %118 = vmatpush1.msra.mxu0 %v51
    %119 = vmatprep.subr.mxu0 %v48
    %120 = vmatpush1.msra.mxu0 %v47
    %121 = vmatprep.subr.mxu0 0.0
    %122 = vmatpush2.msra.mxu0 0.0
    %123 = vmatprep.subr.mxu0 0.0
    %124 = vmatpush2.msra.mxu0 0.0
    %125 = vmatprep.subr.mxu0 0.0
    %126 = vmatpush2.msra.mxu0 0.0
    %127 = vmatprep.subr.mxu0 0.0
    %128 = vmatpush2.msra.mxu0 0.0
    %129 = vmatprep.subr.mxu0 0.0
    %130 = vmatpush2.msra.mxu0 0.0
    %131 = vmatprep.subr.mxu0 0.0
    %132 = vmatpush2.msra.mxu0 0.0
    %133 = vmatprep.subr.mxu0 0.0
    %134 = vmatpush2.msra.mxu0 0.0
    %135 = vmatprep.subr.mxu0 0.0
    %136 = vmatpush2.msra.mxu0 0.0
    %137 = vmatprep.subr.mxu0 0.0
    %138 = vmatpush2.msra.mxu0 0.0
    %139 = vmatprep.subr.mxu0 0.0
    %140 = vmatpush2.msra.mxu0 0.0
    %141 = vmatprep.subr.mxu0 0.0
    %142 = vmatpush2.msra.mxu0 0.0
    %143 = vmatprep.subr.mxu0 0.0
    %144 = vmatpush2.msra.mxu0 0.0
    %145 = vmatprep.subr.mxu0 0.0
    %146 = vmatpush2.msra.mxu0 0.0
    %147 = vmatprep.subr.mxu0 0.0
    %148 = vmatpush2.msra.mxu0 0.0
    %149 = vmatprep.subr.mxu0 0.0
    %150 = vmatpush2.msra.mxu0 0.0
    %151 = vmatprep.subr.mxu0 0.0
    %152 = vmatpush2.msra.mxu0 0.0
    %153 = vmatprep.mubr.f32.mxu0 0.0
    %154 = vmatmul.mubr.f32.gmra.mxu0 %v87
    %v155 = vpop.f32.mrf.mxu0
    %v156 = vadd.f32 %v68, %v155
    %v157 = vpop.f32.mrf.mxu0
    %v158 = vadd.f32 %v72, %v157
    %159 = vdwg.mxu0
    %160 = vmatprep.subr.mxu0 0.0
    %161 = vmatpush1.msra.mxu0 0.0
    %162 = vmatprep.subr.mxu0 0.0
    %163 = vmatpush1.msra.mxu0 0.0
    %164 = vmatprep.subr.mxu0 0.0
    %165 = vmatpush1.msra.mxu0 0.0
    %166 = vmatprep.subr.mxu0 0.0
    %167 = vmatpush1.msra.mxu0 0.0
    %168 = vmatprep.subr.mxu0 0.0
    %169 = vmatpush1.msra.mxu0 0.0
    %170 = vmatprep.subr.mxu0 0.0
    %171 = vmatpush1.msra.mxu0 0.0
    %172 = vmatprep.subr.mxu0 0.0
    %173 = vmatpush1.msra.mxu0 0.0
    %174 = vmatprep.subr.mxu0 0.0
    %175 = vmatpush1.msra.mxu0 0.0
    %176 = vmatprep.subr.mxu0 0.0
    %177 = vmatpush1.msra.mxu0 0.0
    %178 = vmatprep.subr.mxu0 0.0
    %179 = vmatpush1.msra.mxu0 0.0
    %180 = vmatprep.subr.mxu0 0.0
    %181 = vmatpush1.msra.mxu0 0.0
    %182 = vmatprep.subr.mxu0 0.0
    %183 = vmatpush1.msra.mxu0 0.0
    %184 = vmatprep.subr.mxu0 %v62
    %185 = vmatpush1.msra.mxu0 %v61
    %186 = vmatprep.subr.mxu0 %v58
    %187 = vmatpush1.msra.mxu0 %v57
    %188 = vmatprep.subr.mxu0 %v54
    %189 = vmatpush1.msra.mxu0 %v53
    %190 = vmatprep.subr.mxu0 %v50
    %191 = vmatpush1.msra.mxu0 %v49
    %192 = vmatprep.subr.mxu0 0.0
    %193 = vmatpush2.msra.mxu0 0.0
    %194 = vmatprep.subr.mxu0 0.0
    %195 = vmatpush2.msra.mxu0 0.0
    %196 = vmatprep.subr.mxu0 0.0
    %197 = vmatpush2.msra.mxu0 0.0
    %198 = vmatprep.subr.mxu0 0.0
    %199 = vmatpush2.msra.mxu0 0.0
    %200 = vmatprep.subr.mxu0 0.0
    %201 = vmatpush2.msra.mxu0 0.0
    %202 = vmatprep.subr.mxu0 0.0
    %203 = vmatpush2.msra.mxu0 0.0
    %204 = vmatprep.subr.mxu0 0.0
    %205 = vmatpush2.msra.mxu0 0.0
    %206 = vmatprep.subr.mxu0 0.0
    %207 = vmatpush2.msra.mxu0 0.0
    %208 = vmatprep.subr.mxu0 0.0
    %209 = vmatpush2.msra.mxu0 0.0
    %210 = vmatprep.subr.mxu0 0.0
    %211 = vmatpush2.msra.mxu0 0.0
    %212 = vmatprep.subr.mxu0 0.0
    %213 = vmatpush2.msra.mxu0 0.0
    %214 = vmatprep.subr.mxu0 0.0
    %215 = vmatpush2.msra.mxu0 0.0
    %216 = vmatprep.subr.mxu0 0.0
    %217 = vmatpush2.msra.mxu0 0.0
    %218 = vmatprep.subr.mxu0 0.0
    %219 = vmatpush2.msra.mxu0 0.0
    %220 = vmatprep.subr.mxu0 0.0
    %221 = vmatpush2.msra.mxu0 0.0
    %222 = vmatprep.subr.mxu0 0.0
    %223 = vmatpush2.msra.mxu0 0.0
    %224 = vmatprep.mubr.f32.mxu0 0.0
    %225 = vmatmul.mubr.f32.gmra.mxu0 %v87
    %v226 = vpop.f32.mrf.mxu0
    %v227 = vadd.f32 %v76, %v226
    %v228 = vpop.f32.mrf.mxu0
    %v229 = vadd.f32 %v80, %v228
    %230 = vdwg.mxu0
    %v231 = vmax.f32 %v156, 0.0
    %v232 = vmax.f32 %v158, 0.0
    %v233 = vmax.f32 %v227, 0.0
    %v234 = vmax.f32 %v229, 0.0
    %v235 = vld [vmem:[#allocation2] sm:$0xff]
    %v236 = vld [vmem:[#allocation2 + $0x8] sm:$0xff]
    %v237 = vld [vmem:[#allocation2 + $0x10] sm:$0xff]
    %v238 = vld [vmem:[#allocation2 + $0x18] sm:$0xff]
    %v239 = vld [vmem:[#allocation2 + $0x20] sm:$0xff]
    %v240 = vld [vmem:[#allocation2 + $0x28] sm:$0xff]
    %v241 = vld [vmem:[#allocation2 + $0x30] sm:$0xff]
    %v242 = vld [vmem:[#allocation2 + $0x38] sm:$0xff]
    %v243 = vld [vmem:[#allocation2 + $0x40] sm:$0xff]
    %v244 = vld [vmem:[#allocation2 + $0x48] sm:$0xff]
    %v245 = vld [vmem:[#allocation2 + $0x50] sm:$0xff]
    %v246 = vld [vmem:[#allocation2 + $0x58] sm:$0xff]
    %v247 = vld [vmem:[#allocation2 + $0x60] sm:$0xff]
    %v248 = vld [vmem:[#allocation2 + $0x68] sm:$0xff]
    %v249 = vld [vmem:[#allocation2 + $0x70] sm:$0xff]
    %v250 = vld [vmem:[#allocation2 + $0x78] sm:$0xff]
    %v251 = vld [vmem:[#allocation2 + $0x80] sm:$0xff]
    %v252 = vld [vmem:[#allocation2 + $0x88] sm:$0xff]
    %v253 = vld [vmem:[#allocation2 + $0x90] sm:$0xff]
    %v254 = vld [vmem:[#allocation2 + $0x98] sm:$0xff]
    %v255 = vld [vmem:[#allocation2 + $0xa0] sm:$0xff]
    %v256 = vld [vmem:[#allocation2 + $0xa8] sm:$0xff]
    %v257 = vld [vmem:[#allocation2 + $0xb0] sm:$0xff]
    %v258 = vld [vmem:[#allocation2 + $0xb8] sm:$0xff]
    %v259 = vld [vmem:[#allocation2 + $0xc0] sm:$0xff]
    %v260 = vld [vmem:[#allocation2 + $0xc8] sm:$0xff]
    %v261 = vld [vmem:[#allocation2 + $0xd0] sm:$0xff]
    %v262 = vld [vmem:[#allocation2 + $0xd8] sm:$0xff]
    %v263 = vld [vmem:[#allocation2 + $0xe0] sm:$0xff]
    %v264 = vld [vmem:[#allocation2 + $0xe8] sm:$0xff]
    %v265 = vld [vmem:[#allocation2 + $0xf0] sm:$0xff]
    %v266 = vld [vmem:[#allocation2 + $0xf8] sm:$0xff]
    %v267 = vld [vmem:[#allocation2 + $0x100] sm:$0xff]
    %v268 = vld [vmem:[#allocation2 + $0x108] sm:$0xff]
    %v269 = vld [vmem:[#allocation2 + $0x110] sm:$0xff]
    %v270 = vld [vmem:[#allocation2 + $0x118] sm:$0xff]
    %v271 = vld [vmem:[#allocation2 + $0x120] sm:$0xff]
    %v272 = vld [vmem:[#allocation2 + $0x128] sm:$0xff]
    %v273 = vld [vmem:[#allocation2 + $0x130] sm:$0xff]
    %v274 = vld [vmem:[#allocation2 + $0x138] sm:$0xff]
    %v275 = vld [vmem:[#allocation2 + $0x140] sm:$0xff]
    %v276 = vld [vmem:[#allocation2 + $0x148] sm:$0xff]
    %v277 = vld [vmem:[#allocation2 + $0x150] sm:$0xff]
    %v278 = vld [vmem:[#allocation2 + $0x158] sm:$0xff]
    %v279 = vld [vmem:[#allocation2 + $0x160] sm:$0xff]
    %v280 = vld [vmem:[#allocation2 + $0x168] sm:$0xff]
    %v281 = vld [vmem:[#allocation2 + $0x170] sm:$0xff]
    %v282 = vld [vmem:[#allocation2 + $0x178] sm:$0xff]
    %v283 = vld [vmem:[#allocation2 + $0x180] sm:$0xff]
    %v284 = vld [vmem:[#allocation2 + $0x188] sm:$0xff]
    %v285 = vld [vmem:[#allocation2 + $0x190] sm:$0xff]
    %v286 = vld [vmem:[#allocation2 + $0x198] sm:$0xff]
    %v287 = vld [vmem:[#allocation2 + $0x1a0] sm:$0xff]
    %v288 = vld [vmem:[#allocation2 + $0x1a8] sm:$0xff]
    %v289 = vld [vmem:[#allocation2 + $0x1b0] sm:$0xff]
    %v290 = vld [vmem:[#allocation2 + $0x1b8] sm:$0xff]
    %v291 = vld [vmem:[#allocation2 + $0x1c0] sm:$0xff]
    %v292 = vld [vmem:[#allocation2 + $0x1c8] sm:$0xff]
    %v293 = vld [vmem:[#allocation2 + $0x1d0] sm:$0xff]
    %v294 = vld [vmem:[#allocation2 + $0x1d8] sm:$0xff]
    %v295 = vld [vmem:[#allocation2 + $0x1e0] sm:$0xff]
    %v296 = vld [vmem:[#allocation2 + $0x1e8] sm:$0xff]
    %v297 = vld [vmem:[#allocation2 + $0x1f0] sm:$0xff]
    %v298 = vld [vmem:[#allocation2 + $0x1f8] sm:$0xff]
    %v299 = vld [vmem:[#allocation2 + $0x200] sm:$0xff]
    %v300 = vld [vmem:[#allocation2 + $0x208] sm:$0xff]
    %v301 = vld [vmem:[#allocation2 + $0x210] sm:$0xff]
    %v302 = vld [vmem:[#allocation2 + $0x218] sm:$0xff]
    %v303 = vld [vmem:[#allocation2 + $0x220] sm:$0xff]
    %v304 = vld [vmem:[#allocation2 + $0x228] sm:$0xff]
    %v305 = vld [vmem:[#allocation2 + $0x230] sm:$0xff]
    %v306 = vld [vmem:[#allocation2 + $0x238] sm:$0xff]
    %v307 = vld [vmem:[#allocation2 + $0x240] sm:$0xff]
    %v308 = vld [vmem:[#allocation2 + $0x248] sm:$0xff]
    %v309 = vld [vmem:[#allocation2 + $0x250] sm:$0xff]
    %v310 = vld [vmem:[#allocation2 + $0x258] sm:$0xff]
    %v311 = vld [vmem:[#allocation2 + $0x260] sm:$0xff]
    %v312 = vld [vmem:[#allocation2 + $0x268] sm:$0xff]
    %v313 = vld [vmem:[#allocation2 + $0x270] sm:$0xff]
    %v314 = vld [vmem:[#allocation2 + $0x278] sm:$0xff]
    %v315 = vld [vmem:[#allocation2 + $0x280] sm:$0xff]
    %v316 = vld [vmem:[#allocation2 + $0x288] sm:$0xff]
    %v317 = vld [vmem:[#allocation2 + $0x290] sm:$0xff]
    %v318 = vld [vmem:[#allocation2 + $0x298] sm:$0xff]
    %v319 = vld [vmem:[#allocation2 + $0x2a0] sm:$0xff]
    %v320 = vld [vmem:[#allocation2 + $0x2a8] sm:$0xff]
    %v321 = vld [vmem:[#allocation2 + $0x2b0] sm:$0xff]
    %v322 = vld [vmem:[#allocation2 + $0x2b8] sm:$0xff]
    %v323 = vld [vmem:[#allocation2 + $0x2c0] sm:$0xff]
    %v324 = vld [vmem:[#allocation2 + $0x2c8] sm:$0xff]
    %v325 = vld [vmem:[#allocation2 + $0x2d0] sm:$0xff]
    %v326 = vld [vmem:[#allocation2 + $0x2d8] sm:$0xff]
    %v327 = vld [vmem:[#allocation2 + $0x2e0] sm:$0xff]
    %v328 = vld [vmem:[#allocation2 + $0x2e8] sm:$0xff]
    %v329 = vld [vmem:[#allocation2 + $0x2f0] sm:$0xff]
    %v330 = vld [vmem:[#allocation2 + $0x2f8] sm:$0xff]
    %v331 = vld [vmem:[#allocation2 + $0x300] sm:$0xff]
    %v332 = vld [vmem:[#allocation2 + $0x308] sm:$0xff]
    %v333 = vld [vmem:[#allocation2 + $0x310] sm:$0xff]
    %v334 = vld [vmem:[#allocation2 + $0x318] sm:$0xff]
    %v335 = vld [vmem:[#allocation2 + $0x320] sm:$0xff]
    %v336 = vld [vmem:[#allocation2 + $0x328] sm:$0xff]
    %v337 = vld [vmem:[#allocation2 + $0x330] sm:$0xff]
    %v338 = vld [vmem:[#allocation2 + $0x338] sm:$0xff]
    %v339 = vld [vmem:[#allocation2 + $0x340] sm:$0xff]
    %v340 = vld [vmem:[#allocation2 + $0x348] sm:$0xff]
    %v341 = vld [vmem:[#allocation2 + $0x350] sm:$0xff]
    %v342 = vld [vmem:[#allocation2 + $0x358] sm:$0xff]
    %v343 = vld [vmem:[#allocation2 + $0x360] sm:$0xff]
    %v344 = vld [vmem:[#allocation2 + $0x368] sm:$0xff]
    %v345 = vld [vmem:[#allocation2 + $0x370] sm:$0xff]
    %v346 = vld [vmem:[#allocation2 + $0x378] sm:$0xff]
    %v347 = vld [vmem:[#allocation2 + $0x380] sm:$0xff]
    %v348 = vld [vmem:[#allocation2 + $0x388] sm:$0xff]
    %v349 = vld [vmem:[#allocation2 + $0x390] sm:$0xff]
    %v350 = vld [vmem:[#allocation2 + $0x398] sm:$0xff]
    %v351 = vld [vmem:[#allocation2 + $0x3a0] sm:$0xff]
    %v352 = vld [vmem:[#allocation2 + $0x3a8] sm:$0xff]
    %v353 = vld [vmem:[#allocation2 + $0x3b0] sm:$0xff]
    %v354 = vld [vmem:[#allocation2 + $0x3b8] sm:$0xff]
    %v355 = vld [vmem:[#allocation2 + $0x3c0] sm:$0xff]
    %v356 = vld [vmem:[#allocation2 + $0x3c8] sm:$0xff]
    %v357 = vld [vmem:[#allocation2 + $0x3d0] sm:$0xff]
    %v358 = vld [vmem:[#allocation2 + $0x3d8] sm:$0xff]
    %v359 = vld [vmem:[#allocation2 + $0x3e0] sm:$0xff]
    %v360 = vld [vmem:[#allocation2 + $0x3e8] sm:$0xff]
    %v361 = vld [vmem:[#allocation2 + $0x3f0] sm:$0xff]
    %v362 = vld [vmem:[#allocation2 + $0x3f8] sm:$0xff]
    %v363 = vld [vmem:[%s4] sm:$0x3]
    %v365 = vlaneseq
    %v366 = vshrl.u32 %v365, 7
    %v367 = vsub.s32 0, %v366
    %v368 = vrot.slane %v363, %v367
    %v369 = vlaneseq
    %v370 = vshrl.u32 %v369, 7
    %v371 = vsub.s32 1, %v370
    %v372 = vrot.slane %v363, %v371
    %375 = vmatprep.subr.mxu0 %v266
    %376 = vmatpush1.msra.mxu0 %v265
    %377 = vmatprep.subr.mxu0 %v264
    %378 = vmatpush1.msra.mxu0 %v263
    %379 = vmatprep.subr.mxu0 %v262
    %380 = vmatpush1.msra.mxu0 %v261
    %381 = vmatprep.subr.mxu0 %v260
    %382 = vmatpush1.msra.mxu0 %v259
    %383 = vmatprep.subr.mxu0 %v258
    %384 = vmatpush1.msra.mxu0 %v257
    %385 = vmatprep.subr.mxu0 %v256
    %386 = vmatpush1.msra.mxu0 %v255
    %387 = vmatprep.subr.mxu0 %v254
    %388 = vmatpush1.msra.mxu0 %v253
    %389 = vmatprep.subr.mxu0 %v252
    %390 = vmatpush1.msra.mxu0 %v251
    %391 = vmatprep.subr.mxu0 %v250
    %392 = vmatpush1.msra.mxu0 %v249
    %393 = vmatprep.subr.mxu0 %v248
    %394 = vmatpush1.msra.mxu0 %v247
    %395 = vmatprep.subr.mxu0 %v246
    %396 = vmatpush1.msra.mxu0 %v245
    %397 = vmatprep.subr.mxu0 %v244
    %398 = vmatpush1.msra.mxu0 %v243
    %399 = vmatprep.subr.mxu0 %v242
    %400 = vmatpush1.msra.mxu0 %v241
    %401 = vmatprep.subr.mxu0 %v240
    %402 = vmatpush1.msra.mxu0 %v239
    %403 = vmatprep.subr.mxu0 %v238
    %404 = vmatpush1.msra.mxu0 %v237
    %405 = vmatprep.subr.mxu0 %v236
    %406 = vmatpush1.msra.mxu0 %v235
    %407 = vmatprep.subr.mxu0 %v298
    %408 = vmatpush2.msra.mxu0 %v297
    %409 = vmatprep.subr.mxu0 %v296
    %410 = vmatpush2.msra.mxu0 %v295
    %411 = vmatprep.subr.mxu0 %v294
    %412 = vmatpush2.msra.mxu0 %v293
    %413 = vmatprep.subr.mxu0 %v292
    %414 = vmatpush2.msra.mxu0 %v291
    %415 = vmatprep.subr.mxu0 %v290
    %416 = vmatpush2.msra.mxu0 %v289
    %417 = vmatprep.subr.mxu0 %v288
    %418 = vmatpush2.msra.mxu0 %v287
    %419 = vmatprep.subr.mxu0 %v286
    %420 = vmatpush2.msra.mxu0 %v285
    %421 = vmatprep.subr.mxu0 %v284
    %422 = vmatpush2.msra.mxu0 %v283
    %423 = vmatprep.subr.mxu0 %v282
    %424 = vmatpush2.msra.mxu0 %v281
    %425 = vmatprep.subr.mxu0 %v280
    %426 = vmatpush2.msra.mxu0 %v279
    %427 = vmatprep.subr.mxu0 %v278
    %428 = vmatpush2.msra.mxu0 %v277
    %429 = vmatprep.subr.mxu0 %v276
    %430 = vmatpush2.msra.mxu0 %v275
    %431 = vmatprep.subr.mxu0 %v274
    %432 = vmatpush2.msra.mxu0 %v273
    %433 = vmatprep.subr.mxu0 %v272
    %434 = vmatpush2.msra.mxu0 %v271
    %435 = vmatprep.subr.mxu0 %v270
    %436 = vmatpush2.msra.mxu0 %v269
    %437 = vmatprep.subr.mxu0 %v268
    %438 = vmatpush2.msra.mxu0 %v267
    %439 = vmatprep.mubr.f32.mxu0 %v232
    %440 = vmatmul.mubr.f32.gmra.mxu0 %v231
    %v441 = vpop.f32.mrf.mxu0
    %v442 = vadd.f32 %v368, %v441
    %v443 = vpop.f32.mrf.mxu0
    %v444 = vadd.f32 %v372, %v443
    %445 = vdwg.mxu0
    %446 = vmatprep.subr.mxu0 %v330
    %447 = vmatpush1.msra.mxu0 %v329
    %448 = vmatprep.subr.mxu0 %v328
    %449 = vmatpush1.msra.mxu0 %v327
    %450 = vmatprep.subr.mxu0 %v326
    %451 = vmatpush1.msra.mxu0 %v325
    %452 = vmatprep.subr.mxu0 %v324
    %453 = vmatpush1.msra.mxu0 %v323
    %454 = vmatprep.subr.mxu0 %v322
    %455 = vmatpush1.msra.mxu0 %v321
    %456 = vmatprep.subr.mxu0 %v320
    %457 = vmatpush1.msra.mxu0 %v319
    %458 = vmatprep.subr.mxu0 %v318
    %459 = vmatpush1.msra.mxu0 %v317
    %460 = vmatprep.subr.mxu0 %v316
    %461 = vmatpush1.msra.mxu0 %v315
    %462 = vmatprep.subr.mxu0 %v314
    %463 = vmatpush1.msra.mxu0 %v313
    %464 = vmatprep.subr.mxu0 %v312
    %465 = vmatpush1.msra.mxu0 %v311
    %466 = vmatprep.subr.mxu0 %v310
    %467 = vmatpush1.msra.mxu0 %v309
    %468 = vmatprep.subr.mxu0 %v308
    %469 = vmatpush1.msra.mxu0 %v307
    %470 = vmatprep.subr.mxu0 %v306
    %471 = vmatpush1.msra.mxu0 %v305
    %472 = vmatprep.subr.mxu0 %v304
    %473 = vmatpush1.msra.mxu0 %v303
    %474 = vmatprep.subr.mxu0 %v302
    %475 = vmatpush1.msra.mxu0 %v301
    %476 = vmatprep.subr.mxu0 %v300
    %477 = vmatpush1.msra.mxu0 %v299
    %478 = vmatprep.subr.mxu0 %v362
    %479 = vmatpush2.msra.mxu0 %v361
    %480 = vmatprep.subr.mxu0 %v360
    %481 = vmatpush2.msra.mxu0 %v359
    %482 = vmatprep.subr.mxu0 %v358
    %483 = vmatpush2.msra.mxu0 %v357
    %484 = vmatprep.subr.mxu0 %v356
    %485 = vmatpush2.msra.mxu0 %v355
    %486 = vmatprep.subr.mxu0 %v354
    %487 = vmatpush2.msra.mxu0 %v353
    %488 = vmatprep.subr.mxu0 %v352
    %489 = vmatpush2.msra.mxu0 %v351
    %490 = vmatprep.subr.mxu0 %v350
    %491 = vmatpush2.msra.mxu0 %v349
    %492 = vmatprep.subr.mxu0 %v348
    %493 = vmatpush2.msra.mxu0 %v347
    %494 = vmatprep.subr.mxu0 %v346
    %495 = vmatpush2.msra.mxu0 %v345
    %496 = vmatprep.subr.mxu0 %v344
    %497 = vmatpush2.msra.mxu0 %v343
    %498 = vmatprep.subr.mxu0 %v342
    %499 = vmatpush2.msra.mxu0 %v341
    %500 = vmatprep.subr.mxu0 %v340
    %501 = vmatpush2.msra.mxu0 %v339
    %502 = vmatprep.subr.mxu0 %v338
    %503 = vmatpush2.msra.mxu0 %v337
    %504 = vmatprep.subr.mxu0 %v336
    %505 = vmatpush2.msra.mxu0 %v335
    %506 = vmatprep.subr.mxu0 %v334
    %507 = vmatpush2.msra.mxu0 %v333
    %508 = vmatprep.subr.mxu0 %v332
    %509 = vmatpush2.msra.mxu0 %v331
    %510 = vmatprep.mubr.f32.mxu0 %v234
    %511 = vmatmul.mubr.f32.gmra.mxu0 %v233
    %v512 = vpop.f32.mrf.mxu0
    %v513 = vadd.f32 %v442, %v512
    %v514 = vpop.f32.mrf.mxu0
    %v515 = vadd.f32 %v444, %v514
    %516 = vdwg.mxu0
    %v517 = vmax.f32 %v513, 0.0
    %v518 = vmax.f32 %v515, 0.0
    %v519 = vld [vmem:[%s5] sm:$0xff]
    %v520 = vld [vmem:[%s5 + $0x8] sm:$0xff]
    %v521 = vld [vmem:[%s5 + $0x10] sm:$0xff]
    %v522 = vld [vmem:[%s5 + $0x18] sm:$0xff]
    %v523 = vld [vmem:[%s5 + $0x20] sm:$0xff]
    %v524 = vld [vmem:[%s5 + $0x28] sm:$0xff]
    %v525 = vld [vmem:[%s5 + $0x30] sm:$0xff]
    %v526 = vld [vmem:[%s5 + $0x38] sm:$0xff]
    %v527 = vld [vmem:[%s5 + $0x40] sm:$0xff]
    %v528 = vld [vmem:[%s5 + $0x48] sm:$0xff]
    %v529 = vld [vmem:[%s5 + $0x50] sm:$0xff]
    %v530 = vld [vmem:[%s5 + $0x58] sm:$0xff]
    %v531 = vld [vmem:[%s5 + $0x60] sm:$0xff]
    %v532 = vld [vmem:[%s5 + $0x68] sm:$0xff]
    %v533 = vld [vmem:[%s5 + $0x70] sm:$0xff]
    %v534 = vld [vmem:[%s5 + $0x78] sm:$0xff]
    %v535 = vld [vmem:[%s5 + $0x80] sm:$0xff]
    %v536 = vld [vmem:[%s5 + $0x88] sm:$0xff]
    %v537 = vld [vmem:[%s5 + $0x90] sm:$0xff]
    %v538 = vld [vmem:[%s5 + $0x98] sm:$0xff]
    %v539 = vld [vmem:[%s5 + $0xa0] sm:$0xff]
    %v540 = vld [vmem:[%s5 + $0xa8] sm:$0xff]
    %v541 = vld [vmem:[%s5 + $0xb0] sm:$0xff]
    %v542 = vld [vmem:[%s5 + $0xb8] sm:$0xff]
    %v543 = vld [vmem:[%s5 + $0xc0] sm:$0xff]
    %v544 = vld [vmem:[%s5 + $0xc8] sm:$0xff]
    %v545 = vld [vmem:[%s5 + $0xd0] sm:$0xff]
    %v546 = vld [vmem:[%s5 + $0xd8] sm:$0xff]
    %v547 = vld [vmem:[%s5 + $0xe0] sm:$0xff]
    %v548 = vld [vmem:[%s5 + $0xe8] sm:$0xff]
    %v549 = vld [vmem:[%s5 + $0xf0] sm:$0xff]
    %v550 = vld [vmem:[%s5 + $0xf8] sm:$0xff]
    %v551 = vld [vmem:[%s6] sm:$0x1]
    %v553 = vlaneseq
    %v554 = vshrl.u32 %v553, 7
    %v555 = vsub.s32 0, %v554
    %v556 = vrot.slane %v551, %v555
    %558 = vmatprep.subr.mxu0 0.0
    %559 = vmatpush1.msra.mxu0 %v534
    %560 = vmatprep.subr.mxu0 0.0
    %561 = vmatpush1.msra.mxu0 %v533
    %562 = vmatprep.subr.mxu0 0.0
    %563 = vmatpush1.msra.mxu0 %v532
    %564 = vmatprep.subr.mxu0 0.0
    %565 = vmatpush1.msra.mxu0 %v531
    %566 = vmatprep.subr.mxu0 0.0
    %567 = vmatpush1.msra.mxu0 %v530
    %568 = vmatprep.subr.mxu0 0.0
    %569 = vmatpush1.msra.mxu0 %v529
    %570 = vmatprep.subr.mxu0 0.0
    %571 = vmatpush1.msra.mxu0 %v528
    %572 = vmatprep.subr.mxu0 0.0
    %573 = vmatpush1.msra.mxu0 %v527
    %574 = vmatprep.subr.mxu0 0.0
    %575 = vmatpush1.msra.mxu0 %v526
    %576 = vmatprep.subr.mxu0 0.0
    %577 = vmatpush1.msra.mxu0 %v525
    %578 = vmatprep.subr.mxu0 0.0
    %579 = vmatpush1.msra.mxu0 %v524
    %580 = vmatprep.subr.mxu0 0.0
    %581 = vmatpush1.msra.mxu0 %v523
    %582 = vmatprep.subr.mxu0 0.0
    %583 = vmatpush1.msra.mxu0 %v522
    %584 = vmatprep.subr.mxu0 0.0
    %585 = vmatpush1.msra.mxu0 %v521
    %586 = vmatprep.subr.mxu0 0.0
    %587 = vmatpush1.msra.mxu0 %v520
    %588 = vmatprep.subr.mxu0 0.0
    %589 = vmatpush1.msra.mxu0 %v519
    %590 = vmatprep.subr.mxu0 0.0
    %591 = vmatpush2.msra.mxu0 %v550
    %592 = vmatprep.subr.mxu0 0.0
    %593 = vmatpush2.msra.mxu0 %v549
    %594 = vmatprep.subr.mxu0 0.0
    %595 = vmatpush2.msra.mxu0 %v548
    %596 = vmatprep.subr.mxu0 0.0
    %597 = vmatpush2.msra.mxu0 %v547
    %598 = vmatprep.subr.mxu0 0.0
    %599 = vmatpush2.msra.mxu0 %v546
    %600 = vmatprep.subr.mxu0 0.0
    %601 = vmatpush2.msra.mxu0 %v545
    %602 = vmatprep.subr.mxu0 0.0
    %603 = vmatpush2.msra.mxu0 %v544
    %604 = vmatprep.subr.mxu0 0.0
    %605 = vmatpush2.msra.mxu0 %v543
    %606 = vmatprep.subr.mxu0 0.0
    %607 = vmatpush2.msra.mxu0 %v542
    %608 = vmatprep.subr.mxu0 0.0
    %609 = vmatpush2.msra.mxu0 %v541
    %610 = vmatprep.subr.mxu0 0.0
    %611 = vmatpush2.msra.mxu0 %v540
    %612 = vmatprep.subr.mxu0 0.0
    %613 = vmatpush2.msra.mxu0 %v539
    %614 = vmatprep.subr.mxu0 0.0
    %615 = vmatpush2.msra.mxu0 %v538
    %616 = vmatprep.subr.mxu0 0.0
    %617 = vmatpush2.msra.mxu0 %v537
    %618 = vmatprep.subr.mxu0 0.0
    %619 = vmatpush2.msra.mxu0 %v536
    %620 = vmatprep.subr.mxu0 0.0
    %621 = vmatpush2.msra.mxu0 %v535
    %622 = vmatprep.mubr.f32.mxu0 %v518
    %623 = vmatmul.mubr.f32.gmra.mxu0 %v517
    %v624 = vpop.f32.mrf.mxu0
    %v625 = vadd.f32 %v556, %v624
    %v626 = vpop.f32.mrf.mxu0
    %627 = vdwg.mxu0
    %v628 = vmax.f32 %v625, 0.0
    %v629 = vld [vmem:[%s7] sm:$0xff]
    %v630 = vld [vmem:[%s7 + $0x8] sm:$0xff]
    %v631 = vld [vmem:[%s7 + $0x10] sm:$0xff]
    %v632 = vld [vmem:[%s7 + $0x18] sm:$0xff]
    %v633 = vld [vmem:[%s7 + $0x20] sm:$0xff]
    %v634 = vld [vmem:[%s7 + $0x28] sm:$0xff]
    %v635 = vld [vmem:[%s7 + $0x30] sm:$0xff]
    %v636 = vld [vmem:[%s7 + $0x38] sm:$0xff]
    %v637 = vld [vmem:[%s8] sm:$0x1]
    %v639 = vlaneseq
    %v640 = vshrl.u32 %v639, 7
    %v641 = vsub.s32 0, %v640
    %v642 = vrot.slane %v637, %v641
    %vm644 = vcmask 523264
    %v646 = vsel %vm644, %v628, 0
    %648 = vmatprep.subr.mxu0 0.0
    %649 = vmatpush1.msra.mxu0 0.0
    %650 = vmatprep.subr.mxu0 0.0
    %651 = vmatpush1.msra.mxu0 0.0
    %652 = vmatprep.subr.mxu0 0.0
    %653 = vmatpush1.msra.mxu0 0.0
    %654 = vmatprep.subr.mxu0 0.0
    %655 = vmatpush1.msra.mxu0 0.0
    %656 = vmatprep.subr.mxu0 0.0
    %657 = vmatpush1.msra.mxu0 0.0
    %658 = vmatprep.subr.mxu0 0.0
    %659 = vmatpush1.msra.mxu0 0.0
    %660 = vmatprep.subr.mxu0 0.0
    %661 = vmatpush1.msra.mxu0 0.0
    %662 = vmatprep.subr.mxu0 0.0
    %663 = vmatpush1.msra.mxu0 0.0
    %664 = vmatprep.subr.mxu0 0.0
    %665 = vmatpush1.msra.mxu0 %v636
    %666 = vmatprep.subr.mxu0 0.0
    %667 = vmatpush1.msra.mxu0 %v635
    %668 = vmatprep.subr.mxu0 0.0
    %669 = vmatpush1.msra.mxu0 %v634
    %670 = vmatprep.subr.mxu0 0.0
    %671 = vmatpush1.msra.mxu0 %v633
    %672 = vmatprep.subr.mxu0 0.0
    %673 = vmatpush1.msra.mxu0 %v632
    %674 = vmatprep.subr.mxu0 0.0
    %675 = vmatpush1.msra.mxu0 %v631
    %676 = vmatprep.subr.mxu0 0.0
    %677 = vmatpush1.msra.mxu0 %v630
    %678 = vmatprep.subr.mxu0 0.0
    %679 = vmatpush1.msra.mxu0 %v629
    %680 = vmatprep.subr.mxu0 0.0
    %681 = vmatpush2.msra.mxu0 0.0
    %682 = vmatprep.subr.mxu0 0.0
    %683 = vmatpush2.msra.mxu0 0.0
    %684 = vmatprep.subr.mxu0 0.0
    %685 = vmatpush2.msra.mxu0 0.0
    %686 = vmatprep.subr.mxu0 0.0
    %687 = vmatpush2.msra.mxu0 0.0
    %688 = vmatprep.subr.mxu0 0.0
    %689 = vmatpush2.msra.mxu0 0.0
    %690 = vmatprep.subr.mxu0 0.0
    %691 = vmatpush2.msra.mxu0 0.0
    %692 = vmatprep.subr.mxu0 0.0
    %693 = vmatpush2.msra.mxu0 0.0
    %694 = vmatprep.subr.mxu0 0.0
    %695 = vmatpush2.msra.mxu0 0.0
    %696 = vmatprep.subr.mxu0 0.0
    %697 = vmatpush2.msra.mxu0 0.0
    %698 = vmatprep.subr.mxu0 0.0
    %699 = vmatpush2.msra.mxu0 0.0
    %700 = vmatprep.subr.mxu0 0.0
    %701 = vmatpush2.msra.mxu0 0.0
    %702 = vmatprep.subr.mxu0 0.0
    %703 = vmatpush2.msra.mxu0 0.0
    %704 = vmatprep.subr.mxu0 0.0
    %705 = vmatpush2.msra.mxu0 0.0
    %706 = vmatprep.subr.mxu0 0.0
    %707 = vmatpush2.msra.mxu0 0.0
    %708 = vmatprep.subr.mxu0 0.0
    %709 = vmatpush2.msra.mxu0 0.0
    %710 = vmatprep.subr.mxu0 0.0
    %711 = vmatpush2.msra.mxu0 0.0
    %712 = vmatprep.mubr.f32.mxu0 0.0
    %713 = vmatmul.mubr.f32.gmra.mxu0 %v646
    %v714 = vpop.f32.mrf.mxu0
    %v715 = vadd.f32 %v642, %v714
    %v716 = vpop.f32.mrf.mxu0
    %717 = vdwg.mxu0
    %718 = vst [vmem:[%s9] sm:$0xff] %v715
    // Predicated region
    $region42: #{critic_best_forward.1} parent=1 // pred_check
      _
    $region43: #{critic_best_forward.1} parent=1 // pred_check_branch
      %720 = sbr.rel (0) target = $region45
    $region44: #{critic_best_forward.1} parent=1 // pred_region
      _
    $region45: #{critic_best_forward.1} parent=1 // pred_fallthru
      _
    // Predicated region
    $region46: #{critic_best_forward.1} parent=1 // pred_check
      _
    $region47: #{critic_best_forward.1} parent=1 // pred_check_branch
      %722 = sbr.rel (0) target = $region49
    $region48: #{critic_best_forward.1} parent=1 // pred_region
      _
    $region49: #{critic_best_forward.1} parent=1 // pred_fallthru
      _
    %723 = vsyncpa [#allocation3], 1

</llo_original>
